<compile_context>
chip_gen: v7x
topology: tpu7x:2x2x1
jax: 0.10.0
libtpu: 0.0.40
codegen_flags: <defaults>
</compile_context>

<pallas_src>
import math
import functools

import jax
import jax.numpy as jnp
from jax.experimental import pallas as pl
from jax.experimental.pallas import tpu as pltpu


DEFAULT_TOKENS_PER_STEP = 64
RESIDENT_LUT_MAX_BYTES = 32 * 1024 * 1024   # stage table in VMEM below this


def _round_up(x, m):
    return ((x + m - 1) // m) * m


def _sublane_granule(dtype):
    # full sublane pack for the table/output dtype: 8 (f32), 16 (bf16), 32 (i8)
    return max(8, 32 // jnp.dtype(dtype).itemsize)


# --------------------------------------------------------------------------- #
# Path 1: VMEM-resident table                                                 #
# --------------------------------------------------------------------------- #

def _embed_resident_kernel(ids_ref, lut_ref, o_ref, *, tn, scale):
    """Gather `tn` rows from the VMEM-resident table straight into the output."""
    base = pl.program_id(0) * tn
    for r in range(tn):                       # tn is small & static -> unrolled
        tok = ids_ref[base + r]               # SMEM scalar read
        row = lut_ref[pl.ds(tok, 1), :]       # (1, D) dynamic-row VMEM load
        o_ref[pl.ds(r, 1), :] = (row.astype(jnp.float32) * scale).astype(o_ref.dtype)


def _embed_resident(flat_ids, lut, n_tokens, tn, scale):
    V, D = lut.shape
    n_steps = (n_tokens + tn - 1) // tn
    itemsize = jnp.dtype(lut.dtype).itemsize
    vmem_needed = V * D * itemsize + 2 * tn * D * itemsize + (2 << 20)

    kernel = functools.partial(_embed_resident_kernel, tn=tn, scale=scale)
    return pl.pallas_call(
        kernel,
        out_shape=jax.ShapeDtypeStruct((n_tokens, D), lut.dtype),
        grid_spec=pltpu.PrefetchScalarGridSpec(
            num_scalar_prefetch=1,                 # token ids live in SMEM
            grid=(n_steps,),
            in_specs=[
                # whole table resident in VMEM: one sequential HBM read,
                # no per-step DMA, no double buffering.
                pl.BlockSpec(memory_space=pltpu.MemorySpace.VMEM),
            ],
            out_specs=pl.BlockSpec((tn, D), lambda i, ids_ref: (i, 0)),
        ),
        compiler_params=pltpu.CompilerParams(
            dimension_semantics=("parallel",),     # no carried state -> megacore OK
            vmem_limit_bytes=int(max(vmem_needed, 16 << 20)),
        ),
    )(flat_ids, lut)


# --------------------------------------------------------------------------- #
# Path 2: table stays in HBM, manual double-buffered row-gather DMA (P4)     #
# --------------------------------------------------------------------------- #

def _embed_hbm_kernel(ids_ref, lut_hbm, o_ref, buf, sem, *, tn, scale):
    i = pl.program_id(0)
    n = pl.num_programs(0)
    slot = i % 2

    def issue(step, to_slot):
        base = step * tn
        for r in range(tn):
            tok = ids_ref[base + r]
            pltpu.make_async_copy(
                lut_hbm.at[pl.ds(tok, 1), :],
                buf.at[to_slot, pl.ds(r, 1), :],
                sem.at[to_slot],
            ).start()

    @pl.when(i == 0)
    def _():                         # prime the pipeline for the first step
        issue(0, 0)

    @pl.when(i + 1 < n)
    def _():                         # prefetch next step into the other slot
        issue(i + 1, 1 - slot)

    # Wait for this step's tn equal-sized row copies (shared per-slot semaphore).
    for r in range(tn):
        pltpu.make_async_copy(
            lut_hbm.at[pl.ds(0, 1), :],
            buf.at[slot, pl.ds(r, 1), :],
            sem.at[slot],
        ).wait()

    rows = buf[slot]                 # (tn, D) dense VMEM load
    o_ref[...] = (rows.astype(jnp.float32) * scale).astype(o_ref.dtype)


def _embed_hbm(flat_ids, lut, n_tokens, tn, scale):
    V, D = lut.shape
    n_steps = (n_tokens + tn - 1) // tn

    kernel = functools.partial(_embed_hbm_kernel, tn=tn, scale=scale)
    return pl.pallas_call(
        kernel,
        out_shape=jax.ShapeDtypeStruct((n_tokens, D), lut.dtype),
        grid_spec=pltpu.PrefetchScalarGridSpec(
            num_scalar_prefetch=1,                 # token ids live in SMEM
            grid=(n_steps,),
            in_specs=[pl.BlockSpec(memory_space=pl.ANY)],   # lut stays in HBM
            out_specs=pl.BlockSpec((tn, D), lambda i, ids_ref: (i, 0)),
            scratch_shapes=[
                pltpu.VMEM((2, tn, D), lut.dtype),         # double buffer
                pltpu.SemaphoreType.DMA((2,)),             # one sem per slot
            ],
        ),
        compiler_params=pltpu.CompilerParams(
            dimension_semantics=("arbitrary",),    # double buffer carried across steps
        ),
    )(flat_ids, lut)


# --------------------------------------------------------------------------- #
# Wrapper                                                                     #
# --------------------------------------------------------------------------- #

def embeddings_forward(ids, lut, *, tokens_per_step=DEFAULT_TOKENS_PER_STEP,
                       gather="auto", resident_max_bytes=RESIDENT_LUT_MAX_BYTES):
    """ids: (B, S) integer tokens; lut: (V, D) embedding table. Returns (B, S, D)."""
    B, S = ids.shape
    V, D = lut.shape
    N = B * S
    scale = math.sqrt(D)    # PyTorch: self.lut(x) * math.sqrt(self.embedding_dim)

    g = _sublane_granule(lut.dtype)
    tn = max(g, (int(tokens_per_step) // g) * g)   # sublane-pack aligned tile
    tn = min(tn, _round_up(N, g))                  # don't exceed the token count
    n_steps = (N + tn - 1) // tn
    n_pad = n_steps * tn

    flat_ids = ids.reshape(N).astype(jnp.int32)
    if n_pad != N:
        # Pad only the (cheap, SMEM-resident) id vector with row 0; the output
        # keeps exactly N rows and the tail block's writeback is masked.
        flat_ids = jnp.concatenate(
            [flat_ids, jnp.zeros((n_pad - N,), jnp.int32)], axis=0)

    lut_bytes = V * D * jnp.dtype(lut.dtype).itemsize
    if gather == "auto":
        gather = "resident" if lut_bytes <= resident_max_bytes else "hbm"

    if gather == "resident":
        out = _embed_resident(flat_ids, lut, N, tn, scale)
    else:
        out = _embed_hbm(flat_ids, lut, N, tn, scale)
    return out.reshape(B, S, D)


if __name__ == "__main__":
    B, S = 2, 8      # batch, seq_len
    D = 32           # embedding_dim
    V = 64           # vocab_len

    key = jax.random.PRNGKey(0)
    k_ids, k_lut = jax.random.split(key)
    ids = jax.random.randint(k_ids, (B, S), 0, V, dtype=jnp.int32)
    lut = jax.random.normal(k_lut, (V, D), dtype=jnp.float32)   # nn.Embedding weight

    ref = jnp.take(lut, ids, axis=0) * math.sqrt(D)

    # 1) default path: table fits on-chip -> VMEM-resident gather, single step
    out = jax.block_until_ready(embeddings_forward(ids, lut))
    assert out.shape == (B, S, D)
    assert jnp.allclose(out, ref, atol=1e-5, rtol=1e-5), "resident path mismatch"

    # 2) resident path with a multi-step grid
    out_ms = jax.block_until_ready(embeddings_forward(ids, lut, tokens_per_step=8))
    assert jnp.allclose(out_ms, ref, atol=1e-5, rtol=1e-5), "multi-step resident mismatch"

    # 3) HBM row-gather path (large-vocab variant), multi-step to exercise the
    #    cross-step double-buffered DMA pipeline
    out_hbm = jax.block_until_ready(
        embeddings_forward(ids, lut, gather="hbm", tokens_per_step=8))
    assert jnp.allclose(out_hbm, ref, atol=1e-5, rtol=1e-5), "hbm path mismatch"

    # 4) uneven token count: padded SMEM ids + masked tail block, no output slice
    ids2 = jax.random.randint(k_ids, (2, 13), 0, V, dtype=jnp.int32)
    ref2 = jnp.take(lut, ids2, axis=0) * math.sqrt(D)
    out2 = jax.block_until_ready(embeddings_forward(ids2, lut))
    assert out2.shape == (2, 13, D)
    assert jnp.allclose(out2, ref2, atol=1e-5, rtol=1e-5), "uneven tail mismatch"

    print("KERNEL_OK")
</pallas_src>

<mosaic_0001>
module attributes {stable_mosaic.version = 11 : i64} {
  func.func @_embed_resident_kernel(%arg0: i32, %arg1: memref<16xi32, #tpu.memory_space<smem>>, %arg2: memref<64x32xf32, #tpu.memory_space<vmem>>, %arg3: memref<16x32xf32, #tpu.memory_space<vmem>>) attributes {dimension_semantics = [#tpu.dimension_semantics<parallel>], iteration_bounds = array<i64: 1>, scalar_prefetch = 1 : i64, scratch_operands = 0 : i64, tpu.core_type = #tpu.core_type<tc>, window_params = [{pipeline_mode = #tpu.pipeline_mode<synchronous>, transform_indices = @transform_0, window_bounds = array<i64: 64, 32>}, {transform_indices = @transform_1, window_bounds = array<i64: 16, 32>}]} {
    %c16_i32 = arith.constant 16 : i32
    %0 = arith.muli %arg0, %c16_i32 : i32
    %c0_i32 = arith.constant 0 : i32
    %1 = arith.addi %0, %c0_i32 : i32
    %2 = arith.index_cast %1 : i32 to index
    %3 = memref.load %arg1[%2] : memref<16xi32, #tpu.memory_space<smem>>
    %4 = arith.index_cast %3 : i32 to index
    %c0 = arith.constant 0 : index
    %5 = vector.load %arg2[%4, %c0] : memref<64x32xf32, #tpu.memory_space<vmem>>, vector<1x32xf32>
    %cst = arith.constant 5.65685415 : f32
    %6 = vector.broadcast %cst : f32 to vector<1x32xf32>
    %7 = arith.mulf %5, %6 : vector<1x32xf32>
    %c0_0 = arith.constant 0 : index
    %c0_1 = arith.constant 0 : index
    %8 = vector.load %arg3[%c0_0, %c0_1] : memref<16x32xf32, #tpu.memory_space<vmem>>, vector<1x32xf32>
    tpu.vector_store %arg3[%c0_0, %c0_1], %7 {strides = array<i32>} : memref<16x32xf32, #tpu.memory_space<vmem>>, vector<1x32xf32>,
    %c1_i32 = arith.constant 1 : i32
    %9 = arith.addi %0, %c1_i32 : i32
    %10 = arith.index_cast %9 : i32 to index
    %11 = memref.load %arg1[%10] : memref<16xi32, #tpu.memory_space<smem>>
    %12 = arith.index_cast %11 : i32 to index
    %c0_2 = arith.constant 0 : index
    %13 = vector.load %arg2[%12, %c0_2] : memref<64x32xf32, #tpu.memory_space<vmem>>, vector<1x32xf32>
    %cst_3 = arith.constant 5.65685415 : f32
    %14 = vector.broadcast %cst_3 : f32 to vector<1x32xf32>
    %15 = arith.mulf %13, %14 : vector<1x32xf32>
    %c1 = arith.constant 1 : index
    %c0_4 = arith.constant 0 : index
    %16 = vector.load %arg3[%c1, %c0_4] : memref<16x32xf32, #tpu.memory_space<vmem>>, vector<1x32xf32>
    tpu.vector_store %arg3[%c1, %c0_4], %15 {strides = array<i32>} : memref<16x32xf32, #tpu.memory_space<vmem>>, vector<1x32xf32>,
    %c2_i32 = arith.constant 2 : i32
    %17 = arith.addi %0, %c2_i32 : i32
    %18 = arith.index_cast %17 : i32 to index
    %19 = memref.load %arg1[%18] : memref<16xi32, #tpu.memory_space<smem>>
    %20 = arith.index_cast %19 : i32 to index
    %c0_5 = arith.constant 0 : index
    %21 = vector.load %arg2[%20, %c0_5] : memref<64x32xf32, #tpu.memory_space<vmem>>, vector<1x32xf32>
    %cst_6 = arith.constant 5.65685415 : f32
    %22 = vector.broadcast %cst_6 : f32 to vector<1x32xf32>
    %23 = arith.mulf %21, %22 : vector<1x32xf32>
    %c2 = arith.constant 2 : index
    %c0_7 = arith.constant 0 : index
    %24 = vector.load %arg3[%c2, %c0_7] : memref<16x32xf32, #tpu.memory_space<vmem>>, vector<1x32xf32>
    tpu.vector_store %arg3[%c2, %c0_7], %23 {strides = array<i32>} : memref<16x32xf32, #tpu.memory_space<vmem>>, vector<1x32xf32>,
    %c3_i32 = arith.constant 3 : i32
    %25 = arith.addi %0, %c3_i32 : i32
    %26 = arith.index_cast %25 : i32 to index
    %27 = memref.load %arg1[%26] : memref<16xi32, #tpu.memory_space<smem>>
    %28 = arith.index_cast %27 : i32 to index
    %c0_8 = arith.constant 0 : index
    %29 = vector.load %arg2[%28, %c0_8] : memref<64x32xf32, #tpu.memory_space<vmem>>, vector<1x32xf32>
    %cst_9 = arith.constant 5.65685415 : f32
    %30 = vector.broadcast %cst_9 : f32 to vector<1x32xf32>
    %31 = arith.mulf %29, %30 : vector<1x32xf32>
    %c3 = arith.constant 3 : index
    %c0_10 = arith.constant 0 : index
    %32 = vector.load %arg3[%c3, %c0_10] : memref<16x32xf32, #tpu.memory_space<vmem>>, vector<1x32xf32>
    tpu.vector_store %arg3[%c3, %c0_10], %31 {strides = array<i32>} : memref<16x32xf32, #tpu.memory_space<vmem>>, vector<1x32xf32>,
    %c4_i32 = arith.constant 4 : i32
    %33 = arith.addi %0, %c4_i32 : i32
    %34 = arith.index_cast %33 : i32 to index
    %35 = memref.load %arg1[%34] : memref<16xi32, #tpu.memory_space<smem>>
    %36 = arith.index_cast %35 : i32 to index
    %c0_11 = arith.constant 0 : index
    %37 = vector.load %arg2[%36, %c0_11] : memref<64x32xf32, #tpu.memory_space<vmem>>, vector<1x32xf32>
    %cst_12 = arith.constant 5.65685415 : f32
    %38 = vector.broadcast %cst_12 : f32 to vector<1x32xf32>
    %39 = arith.mulf %37, %38 : vector<1x32xf32>
    %c4 = arith.constant 4 : index
    %c0_13 = arith.constant 0 : index
    %40 = vector.load %arg3[%c4, %c0_13] : memref<16x32xf32, #tpu.memory_space<vmem>>, vector<1x32xf32>
    tpu.vector_store %arg3[%c4, %c0_13], %39 {strides = array<i32>} : memref<16x32xf32, #tpu.memory_space<vmem>>, vector<1x32xf32>,
    %c5_i32 = arith.constant 5 : i32
    %41 = arith.addi %0, %c5_i32 : i32
    %42 = arith.index_cast %41 : i32 to index
    %43 = memref.load %arg1[%42] : memref<16xi32, #tpu.memory_space<smem>>
    %44 = arith.index_cast %43 : i32 to index
    %c0_14 = arith.constant 0 : index
    %45 = vector.load %arg2[%44, %c0_14] : memref<64x32xf32, #tpu.memory_space<vmem>>, vector<1x32xf32>
    %cst_15 = arith.constant 5.65685415 : f32
    %46 = vector.broadcast %cst_15 : f32 to vector<1x32xf32>
    %47 = arith.mulf %45, %46 : vector<1x32xf32>
    %c5 = arith.constant 5 : index
    %c0_16 = arith.constant 0 : index
    %48 = vector.load %arg3[%c5, %c0_16] : memref<16x32xf32, #tpu.memory_space<vmem>>, vector<1x32xf32>
    tpu.vector_store %arg3[%c5, %c0_16], %47 {strides = array<i32>} : memref<16x32xf32, #tpu.memory_space<vmem>>, vector<1x32xf32>,
    %c6_i32 = arith.constant 6 : i32
    %49 = arith.addi %0, %c6_i32 : i32
    %50 = arith.index_cast %49 : i32 to index
    %51 = memref.load %arg1[%50] : memref<16xi32, #tpu.memory_space<smem>>
    %52 = arith.index_cast %51 : i32 to index
    %c0_17 = arith.constant 0 : index
    %53 = vector.load %arg2[%52, %c0_17] : memref<64x32xf32, #tpu.memory_space<vmem>>, vector<1x32xf32>
    %cst_18 = arith.constant 5.65685415 : f32
    %54 = vector.broadcast %cst_18 : f32 to vector<1x32xf32>
    %55 = arith.mulf %53, %54 : vector<1x32xf32>
    %c6 = arith.constant 6 : index
    %c0_19 = arith.constant 0 : index
    %56 = vector.load %arg3[%c6, %c0_19] : memref<16x32xf32, #tpu.memory_space<vmem>>, vector<1x32xf32>
    tpu.vector_store %arg3[%c6, %c0_19], %55 {strides = array<i32>} : memref<16x32xf32, #tpu.memory_space<vmem>>, vector<1x32xf32>,
    %c7_i32 = arith.constant 7 : i32
    %57 = arith.addi %0, %c7_i32 : i32
    %58 = arith.index_cast %57 : i32 to index
    %59 = memref.load %arg1[%58] : memref<16xi32, #tpu.memory_space<smem>>
    %60 = arith.index_cast %59 : i32 to index
    %c0_20 = arith.constant 0 : index
    %61 = vector.load %arg2[%60, %c0_20] : memref<64x32xf32, #tpu.memory_space<vmem>>, vector<1x32xf32>
    %cst_21 = arith.constant 5.65685415 : f32
    %62 = vector.broadcast %cst_21 : f32 to vector<1x32xf32>
    %63 = arith.mulf %61, %62 : vector<1x32xf32>
    %c7 = arith.constant 7 : index
    %c0_22 = arith.constant 0 : index
    %64 = vector.load %arg3[%c7, %c0_22] : memref<16x32xf32, #tpu.memory_space<vmem>>, vector<1x32xf32>
    tpu.vector_store %arg3[%c7, %c0_22], %63 {strides = array<i32>} : memref<16x32xf32, #tpu.memory_space<vmem>>, vector<1x32xf32>,
    %c8_i32 = arith.constant 8 : i32
    %65 = arith.addi %0, %c8_i32 : i32
    %66 = arith.index_cast %65 : i32 to index
    %67 = memref.load %arg1[%66] : memref<16xi32, #tpu.memory_space<smem>>
    %68 = arith.index_cast %67 : i32 to index
    %c0_23 = arith.constant 0 : index
    %69 = vector.load %arg2[%68, %c0_23] : memref<64x32xf32, #tpu.memory_space<vmem>>, vector<1x32xf32>
    %cst_24 = arith.constant 5.65685415 : f32
    %70 = vector.broadcast %cst_24 : f32 to vector<1x32xf32>
    %71 = arith.mulf %69, %70 : vector<1x32xf32>
    %c8 = arith.constant 8 : index
    %c0_25 = arith.constant 0 : index
    %72 = vector.load %arg3[%c8, %c0_25] : memref<16x32xf32, #tpu.memory_space<vmem>>, vector<1x32xf32>
    tpu.vector_store %arg3[%c8, %c0_25], %71 {strides = array<i32>} : memref<16x32xf32, #tpu.memory_space<vmem>>, vector<1x32xf32>,
    %c9_i32 = arith.constant 9 : i32
    %73 = arith.addi %0, %c9_i32 : i32
    %74 = arith.index_cast %73 : i32 to index
    %75 = memref.load %arg1[%74] : memref<16xi32, #tpu.memory_space<smem>>
    %76 = arith.index_cast %75 : i32 to index
    %c0_26 = arith.constant 0 : index
    %77 = vector.load %arg2[%76, %c0_26] : memref<64x32xf32, #tpu.memory_space<vmem>>, vector<1x32xf32>
    %cst_27 = arith.constant 5.65685415 : f32
    %78 = vector.broadcast %cst_27 : f32 to vector<1x32xf32>
    %79 = arith.mulf %77, %78 : vector<1x32xf32>
    %c9 = arith.constant 9 : index
    %c0_28 = arith.constant 0 : index
    %80 = vector.load %arg3[%c9, %c0_28] : memref<16x32xf32, #tpu.memory_space<vmem>>, vector<1x32xf32>
    tpu.vector_store %arg3[%c9, %c0_28], %79 {strides = array<i32>} : memref<16x32xf32, #tpu.memory_space<vmem>>, vector<1x32xf32>,
    %c10_i32 = arith.constant 10 : i32
    %81 = arith.addi %0, %c10_i32 : i32
    %82 = arith.index_cast %81 : i32 to index
    %83 = memref.load %arg1[%82] : memref<16xi32, #tpu.memory_space<smem>>
    %84 = arith.index_cast %83 : i32 to index
    %c0_29 = arith.constant 0 : index
    %85 = vector.load %arg2[%84, %c0_29] : memref<64x32xf32, #tpu.memory_space<vmem>>, vector<1x32xf32>
    %cst_30 = arith.constant 5.65685415 : f32
    %86 = vector.broadcast %cst_30 : f32 to vector<1x32xf32>
    %87 = arith.mulf %85, %86 : vector<1x32xf32>
    %c10 = arith.constant 10 : index
    %c0_31 = arith.constant 0 : index
    %88 = vector.load %arg3[%c10, %c0_31] : memref<16x32xf32, #tpu.memory_space<vmem>>, vector<1x32xf32>
    tpu.vector_store %arg3[%c10, %c0_31], %87 {strides = array<i32>} : memref<16x32xf32, #tpu.memory_space<vmem>>, vector<1x32xf32>,
    %c11_i32 = arith.constant 11 : i32
    %89 = arith.addi %0, %c11_i32 : i32
    %90 = arith.index_cast %89 : i32 to index
    %91 = memref.load %arg1[%90] : memref<16xi32, #tpu.memory_space<smem>>
    %92 = arith.index_cast %91 : i32 to index
    %c0_32 = arith.constant 0 : index
    %93 = vector.load %arg2[%92, %c0_32] : memref<64x32xf32, #tpu.memory_space<vmem>>, vector<1x32xf32>
    %cst_33 = arith.constant 5.65685415 : f32
    %94 = vector.broadcast %cst_33 : f32 to vector<1x32xf32>
    %95 = arith.mulf %93, %94 : vector<1x32xf32>
    %c11 = arith.constant 11 : index
    %c0_34 = arith.constant 0 : index
    %96 = vector.load %arg3[%c11, %c0_34] : memref<16x32xf32, #tpu.memory_space<vmem>>, vector<1x32xf32>
    tpu.vector_store %arg3[%c11, %c0_34], %95 {strides = array<i32>} : memref<16x32xf32, #tpu.memory_space<vmem>>, vector<1x32xf32>,
    %c12_i32 = arith.constant 12 : i32
    %97 = arith.addi %0, %c12_i32 : i32
    %98 = arith.index_cast %97 : i32 to index
    %99 = memref.load %arg1[%98] : memref<16xi32, #tpu.memory_space<smem>>
    %100 = arith.index_cast %99 : i32 to index
    %c0_35 = arith.constant 0 : index
    %101 = vector.load %arg2[%100, %c0_35] : memref<64x32xf32, #tpu.memory_space<vmem>>, vector<1x32xf32>
    %cst_36 = arith.constant 5.65685415 : f32
    %102 = vector.broadcast %cst_36 : f32 to vector<1x32xf32>
    %103 = arith.mulf %101, %102 : vector<1x32xf32>
    %c12 = arith.constant 12 : index
    %c0_37 = arith.constant 0 : index
    %104 = vector.load %arg3[%c12, %c0_37] : memref<16x32xf32, #tpu.memory_space<vmem>>, vector<1x32xf32>
    tpu.vector_store %arg3[%c12, %c0_37], %103 {strides = array<i32>} : memref<16x32xf32, #tpu.memory_space<vmem>>, vector<1x32xf32>,
    %c13_i32 = arith.constant 13 : i32
    %105 = arith.addi %0, %c13_i32 : i32
    %106 = arith.index_cast %105 : i32 to index
    %107 = memref.load %arg1[%106] : memref<16xi32, #tpu.memory_space<smem>>
    %108 = arith.index_cast %107 : i32 to index
    %c0_38 = arith.constant 0 : index
    %109 = vector.load %arg2[%108, %c0_38] : memref<64x32xf32, #tpu.memory_space<vmem>>, vector<1x32xf32>
    %cst_39 = arith.constant 5.65685415 : f32
    %110 = vector.broadcast %cst_39 : f32 to vector<1x32xf32>
    %111 = arith.mulf %109, %110 : vector<1x32xf32>
    %c13 = arith.constant 13 : index
    %c0_40 = arith.constant 0 : index
    %112 = vector.load %arg3[%c13, %c0_40] : memref<16x32xf32, #tpu.memory_space<vmem>>, vector<1x32xf32>
    tpu.vector_store %arg3[%c13, %c0_40], %111 {strides = array<i32>} : memref<16x32xf32, #tpu.memory_space<vmem>>, vector<1x32xf32>,
    %c14_i32 = arith.constant 14 : i32
    %113 = arith.addi %0, %c14_i32 : i32
    %114 = arith.index_cast %113 : i32 to index
    %115 = memref.load %arg1[%114] : memref<16xi32, #tpu.memory_space<smem>>
    %116 = arith.index_cast %115 : i32 to index
    %c0_41 = arith.constant 0 : index
    %117 = vector.load %arg2[%116, %c0_41] : memref<64x32xf32, #tpu.memory_space<vmem>>, vector<1x32xf32>
    %cst_42 = arith.constant 5.65685415 : f32
    %118 = vector.broadcast %cst_42 : f32 to vector<1x32xf32>
    %119 = arith.mulf %117, %118 : vector<1x32xf32>
    %c14 = arith.constant 14 : index
    %c0_43 = arith.constant 0 : index
    %120 = vector.load %arg3[%c14, %c0_43] : memref<16x32xf32, #tpu.memory_space<vmem>>, vector<1x32xf32>
    tpu.vector_store %arg3[%c14, %c0_43], %119 {strides = array<i32>} : memref<16x32xf32, #tpu.memory_space<vmem>>, vector<1x32xf32>,
    %c15_i32 = arith.constant 15 : i32
    %121 = arith.addi %0, %c15_i32 : i32
    %122 = arith.index_cast %121 : i32 to index
    %123 = memref.load %arg1[%122] : memref<16xi32, #tpu.memory_space<smem>>
    %124 = arith.index_cast %123 : i32 to index
    %c0_44 = arith.constant 0 : index
    %125 = vector.load %arg2[%124, %c0_44] : memref<64x32xf32, #tpu.memory_space<vmem>>, vector<1x32xf32>
    %cst_45 = arith.constant 5.65685415 : f32
    %126 = vector.broadcast %cst_45 : f32 to vector<1x32xf32>
    %127 = arith.mulf %125, %126 : vector<1x32xf32>
    %c15 = arith.constant 15 : index
    %c0_46 = arith.constant 0 : index
    %128 = vector.load %arg3[%c15, %c0_46] : memref<16x32xf32, #tpu.memory_space<vmem>>, vector<1x32xf32>
    tpu.vector_store %arg3[%c15, %c0_46], %127 {strides = array<i32>} : memref<16x32xf32, #tpu.memory_space<vmem>>, vector<1x32xf32>,
    return
  }
  func.func @transform_0(%arg0: i32, %arg1: memref<16xi32, #tpu.memory_space<smem>>) -> (i32, i32) {
    %c0_i32 = arith.constant 0 : i32
    %c0_i32_0 = arith.constant 0 : i32
    %c0_i32_1 = arith.constant 0 : i32
    return %c0_i32, %c0_i32_0 : i32, i32
  }
  func.func @transform_1(%arg0: i32, %arg1: memref<16xi32, #tpu.memory_space<smem>>) -> (i32, i32) {
    %c0_i32 = arith.constant 0 : i32
    %c0_i32_0 = arith.constant 0 : i32
    return %arg0, %c0_i32 : i32, i32
  }
}

</mosaic_0001>

<llo_original>
// kernel: tpu_custom_call.1
$region0: #{tpu_custom_call.1}
  #allocation0 [shape = 'u32[]', space=smem, size = 0x4, offset = 0x4, fixed_abs, tag = 'smem constant byte address 0x4 - core index']
  #allocation1 [shape = 'u32[144,128]{1,0:T(1,128)}', space=vmem, size = 0x12000, scoped, tag = 'internal scratch']
  #allocation2 [shape = 's32[1]{0}', space=sflag, size = 0x4, scoped, tag = 'scoped memory for tpu_custom_call.1']
  #allocation3 [shape = 'u8[512]{0}', space=smem, size = 0x200, scoped, tag = 'prefetched SMEM operand 0']
  %s0 = inlined_call_operand.vmem [shape: s32[16], index: 0, kind: input, shape index: {}]
  %s1 = inlined_call_operand.vmem [shape: f32[64,32], index: 1, kind: input, shape index: {}]
  %s2 = inlined_call_operand.hbm [shape: f32[16,32], index: 2, kind: output, shape index: {}]
  %s3 = sld [smem:[#allocation0]]
  $region14: #{tpu_custom_call.1} parent=0
    _
  %s5 = ssub.s32 1, %s3
  %s6 = scalar_select 0, %s5, %s3
  %s7 = sshll.u32 %s0, 4
  %s8 = int_to_ptr.vmem [resolvable:$true] %s7
  %10 = dma.vmem_to_smem %s8, 16, [#allocation3], [#allocation2]
  %11 = dma.done [#allocation2], 16
  %12 = sfence
  $region1: #{tpu_custom_call.1} parent=0
    #allocation4 [shape = 'u8[8192]{0}', space=vmem, size = 0x2000, scoped, tag = 'output window, operand 0, single buffered']
    #allocation5 [shape = 's32[1]{0}', space=sflag, size = 0x4, scoped, tag = 'scoped memory for tpu_custom_call.1']
    %13 = vsyncpa [#allocation5], 0
    // Predicated region
    $region2: #{tpu_custom_call.1} parent=1 // pred_check
      _
    $region3: #{tpu_custom_call.1} parent=1 // pred_check_branch
      %15 = sbr.rel (0) target = $region5
    $region4: #{tpu_custom_call.1} parent=1 // pred_region
      _
    $region5: #{tpu_custom_call.1} parent=1 // pred_fallthru
      _
    %s16 = smul.u32 0, 16
    %s17 = sld [smem:[#allocation3 + %s16]]
    %s18 = scalar_lea.vmem %s1, %s17
    %v19 = vld [vmem:[%s18] sm:$0x1]
    %v20 = vmul.f32 %v19, 5.656854
    %vm21 = vcmask 253952
    %22 = vst.msk [vmem:[#allocation4] sm:$0x1] %vm21, %v20
    %s23 = sadd.s32 %s16, 1
    %s24 = sld [smem:[#allocation3 + %s23]]
    %s25 = scalar_lea.vmem %s1, %s24
    %v26 = vld [vmem:[%s25] sm:$0x1]
    %v27 = vmul.f32 %v26, 5.656854
    %28 = vst.msk [vmem:[#allocation4 + $0x1] sm:$0x1] %vm21, %v27
    %s29 = sadd.s32 %s16, 2
    %s30 = sld [smem:[#allocation3 + %s29]]
    %s31 = scalar_lea.vmem %s1, %s30
    %v32 = vld [vmem:[%s31] sm:$0x1]
    %v33 = vmul.f32 %v32, 5.656854
    %34 = vst.msk [vmem:[#allocation4 + $0x2] sm:$0x1] %vm21, %v33
    %s35 = sadd.s32 %s16, 3
    %s36 = sld [smem:[#allocation3 + %s35]]
    %s37 = scalar_lea.vmem %s1, %s36
    %v38 = vld [vmem:[%s37] sm:$0x1]
    %v39 = vmul.f32 %v38, 5.656854
    %40 = vst.msk [vmem:[#allocation4 + $0x3] sm:$0x1] %vm21, %v39
    %s41 = sadd.s32 %s16, 4
    %s42 = sld [smem:[#allocation3 + %s41]]
    %s43 = scalar_lea.vmem %s1, %s42
    %v44 = vld [vmem:[%s43] sm:$0x1]
    %v45 = vmul.f32 %v44, 5.656854
    %46 = vst.msk [vmem:[#allocation4 + $0x4] sm:$0x1] %vm21, %v45
    %s47 = sadd.s32 %s16, 5
    %s48 = sld [smem:[#allocation3 + %s47]]
    %s49 = scalar_lea.vmem %s1, %s48
    %v50 = vld [vmem:[%s49] sm:$0x1]
    %v51 = vmul.f32 %v50, 5.656854
    %52 = vst.msk [vmem:[#allocation4 + $0x5] sm:$0x1] %vm21, %v51
    %s53 = sadd.s32 %s16, 6
    %s54 = sld [smem:[#allocation3 + %s53]]
    %s55 = scalar_lea.vmem %s1, %s54
    %v56 = vld [vmem:[%s55] sm:$0x1]
    %v57 = vmul.f32 %v56, 5.656854
    %58 = vst.msk [vmem:[#allocation4 + $0x6] sm:$0x1] %vm21, %v57
    %s59 = sadd.s32 %s16, 7
    %s60 = sld [smem:[#allocation3 + %s59]]
    %s61 = scalar_lea.vmem %s1, %s60
    %v62 = vld [vmem:[%s61] sm:$0x1]
    %v63 = vmul.f32 %v62, 5.656854
    %64 = vst.msk [vmem:[#allocation4 + $0x7] sm:$0x1] %vm21, %v63
    %s65 = sadd.s32 %s16, 8
    %s66 = sld [smem:[#allocation3 + %s65]]
    %s67 = scalar_lea.vmem %s1, %s66
    %v68 = vld [vmem:[%s67] sm:$0x1]
    %v69 = vmul.f32 %v68, 5.656854
    %70 = vst.msk [vmem:[#allocation4 + $0x8] sm:$0x1] %vm21, %v69
    %s71 = sadd.s32 %s16, 9
    %s72 = sld [smem:[#allocation3 + %s71]]
    %s73 = scalar_lea.vmem %s1, %s72
    %v74 = vld [vmem:[%s73] sm:$0x1]
    %v75 = vmul.f32 %v74, 5.656854
    %76 = vst.msk [vmem:[#allocation4 + $0x9] sm:$0x1] %vm21, %v75
    %s77 = sadd.s32 %s16, 10
    %s78 = sld [smem:[#allocation3 + %s77]]
    %s79 = scalar_lea.vmem %s1, %s78
    %v80 = vld [vmem:[%s79] sm:$0x1]
    %v81 = vmul.f32 %v80, 5.656854
    %82 = vst.msk [vmem:[#allocation4 + $0xa] sm:$0x1] %vm21, %v81
    %s83 = sadd.s32 %s16, 11
    %s84 = sld [smem:[#allocation3 + %s83]]
    %s85 = scalar_lea.vmem %s1, %s84
    %v86 = vld [vmem:[%s85] sm:$0x1]
    %v87 = vmul.f32 %v86, 5.656854
    %88 = vst.msk [vmem:[#allocation4 + $0xb] sm:$0x1] %vm21, %v87
    %s89 = sadd.s32 %s16, 12
    %s90 = sld [smem:[#allocation3 + %s89]]
    %s91 = scalar_lea.vmem %s1, %s90
    %v92 = vld [vmem:[%s91] sm:$0x1]
    %v93 = vmul.f32 %v92, 5.656854
    %94 = vst.msk [vmem:[#allocation4 + $0xc] sm:$0x1] %vm21, %v93
    %s95 = sadd.s32 %s16, 13
    %s96 = sld [smem:[#allocation3 + %s95]]
    %s97 = scalar_lea.vmem %s1, %s96
    %v98 = vld [vmem:[%s97] sm:$0x1]
    %v99 = vmul.f32 %v98, 5.656854
    %100 = vst.msk [vmem:[#allocation4 + $0xd] sm:$0x1] %vm21, %v99
    %s101 = sadd.s32 %s16, 14
    %s102 = sld [smem:[#allocation3 + %s101]]
    %s103 = scalar_lea.vmem %s1, %s102
    %v104 = vld [vmem:[%s103] sm:$0x1]
    %v105 = vmul.f32 %v104, 5.656854
    %106 = vst.msk [vmem:[#allocation4 + $0xe] sm:$0x1] %vm21, %v105
    %s107 = sadd.s32 %s16, 15
    %s108 = sld [smem:[#allocation3 + %s107]]
    %s109 = scalar_lea.vmem %s1, %s108
    %v110 = vld [vmem:[%s109] sm:$0x1]
    %v111 = vmul.f32 %v110, 5.656854
    %112 = vst.msk [vmem:[#allocation4 + $0xf] sm:$0x1] %vm21, %v111
    // Predicated region
    $region6: #{tpu_custom_call.1} parent=1 // pred_check
      _
    $region7: #{tpu_custom_call.1} parent=1 // pred_check_branch
      %114 = sbr.rel (0) target = $region9
    $region8: #{tpu_custom_call.1} parent=1 // pred_region
      %s116 = ssub.s32 256, 256
      %117 = vsyncadd [#allocation5], %s116
      %s118 = sshll.u32 [#allocation4], 4
      %s119 = int_to_ptr.vmem [resolvable:$true] %s118
      %124 = dma.vmem_to_hbm [thread:$0]  %s119, 256, %s2, [#allocation5], 128, 128, 8
    $region9: #{tpu_custom_call.1} parent=1 // pred_fallthru
      _
    // Predicated region
    $region10: #{tpu_custom_call.1} parent=1 // pred_check
      _
    $region11: #{tpu_custom_call.1} parent=1 // pred_check_branch
      %126 = sbr.rel (0) target = $region13
    $region12: #{tpu_custom_call.1} parent=1 // pred_region
      %127 = dma.done [#allocation5], 256
    $region13: #{tpu_custom_call.1} parent=1 // pred_fallthru
      _
    %128 = vsyncpa [#allocation5], 1

</llo_original>
